<compile_context>
chip_gen: v5e
topology: v5e:2x2
jax: 0.10.0
libtpu: 0.0.40
codegen_flags: <defaults>
</compile_context>

<pallas_src>
import jax
import jax.numpy as jnp
from jax.experimental import pallas as pl
from jax.experimental.pallas import tpu as pltpu


def mha_kernel(x_ref, wq_ref, wk_ref, wv_ref, bq_ref, bk_ref, bv_ref,
               wo_ref, bo_ref, o_ref, acc_ref):
    """Grid = (batch_block, head).

    Per step: project one head for a (Bt, S, D) x-slab, run dense softmax attention for
    that head, and accumulate its output-projection contribution into a resident f32
    scratch.  The last head step adds the output bias and stores the slab.
    """
    h = pl.program_id(1)
    Bt, S, D = x_ref.shape
    R = Bt * S
    hd = wq_ref.shape[-1]

    @pl.when(h == 0)
    def _():
        acc_ref[...] = jnp.zeros_like(acc_ref)

    x = x_ref[...].reshape(R, D)      # leading-dim merge only; native dtype (bf16 stays bf16)
    cdt = x.dtype                     # MXU operand dtype (full-rate bf16 on v5e/v6e/v7x)

    # Per-head projections straight from head-major resident weights: no lane slicing,
    # no head split/merge anywhere in the kernel.  1/sqrt(hd) is folded into wq/bq on
    # the host.  Accumulate in f32 on the MXU.
    q = jnp.dot(x, wq_ref[h], preferred_element_type=jnp.float32) + bq_ref[h]   # (R, hd)
    k = jnp.dot(x, wk_ref[h], preferred_element_type=jnp.float32) + bk_ref[h]
    v = jnp.dot(x, wv_ref[h], preferred_element_type=jnp.float32) + bv_ref[h]

    # Split rows back into per-batch blocks (leading dims only, minor dim hd untouched)
    # and cast back to the input dtype so the attention matmuls run at full MXU rate.
    q = q.reshape(Bt, S, hd).astype(cdt)
    k = k.reshape(Bt, S, hd).astype(cdt)
    v = v.reshape(Bt, S, hd).astype(cdt)

    # TODO(synk): replace with a flash-style online-softmax loop over K tiles for long S.
    s = jnp.einsum('bqe,bke->bqk', q, k, preferred_element_type=jnp.float32)     # (Bt,S,S)
    m = jnp.max(s, axis=-1, keepdims=True)
    p = jnp.exp(s - m)
    l = jnp.sum(p, axis=-1, keepdims=True)
    p = p * pl.reciprocal(l, approx=False)   # exact recip on (Bt,S,1): cheap, keeps parity
    # TODO(synk): attention-weight dropout (p=0.05) is train-only; eval forward skips it.
    ctx = jnp.einsum('bqk,bke->bqe', p.astype(cdt), v,
                     preferred_element_type=jnp.float32)                          # (Bt,S,hd)

    # This head's contribution to the output projection, accumulated in f32.
    ctx = ctx.reshape(R, hd).astype(cdt)
    acc_ref[...] += jnp.dot(ctx, wo_ref[h], preferred_element_type=jnp.float32)   # (R, D)

    @pl.when(h == pl.num_programs(1) - 1)
    def _():
        out = acc_ref[...] + bo_ref[...]
        # NOTE: keep D a multiple of 128 in production so this store is lane-dense.
        o_ref[...] = out.reshape(Bt, S, D).astype(o_ref.dtype)


def _vmem_bytes(bt, S, D, H, itemsize):
    """Approximate per-step VMEM footprint of the kernel (bytes)."""
    hd = D // H
    R = bt * S
    n = 0
    n += 2 * 2 * R * D * itemsize              # x + out slabs, double-buffered
    n += R * D * 4                             # f32 output-projection accumulator scratch
    n += 2 * 4 * D * D * itemsize              # resident head-major weights (dbl-buffered)
    n += 2 * (3 * H * hd + D) * 4              # biases
    n += 3 * R * hd * 4                        # per-head q/k/v in f32 before cast
    n += (2 * bt * S * S + bt * S * hd) * 4    # scores + probs + context (f32)
    return n


def _pick_batch_block(B, S, D, H, itemsize, *, target_rows=512, vmem_budget=48 << 20):
    """Largest batch block that (a) keeps >=2 grid steps when B >= 2 (both v7x
    TensorCores get work), (b) keeps the real VMEM footprint (incl. the S^2 score
    tensors) under a v7x-safe budget, and (c) keeps slabs sublane-aligned."""
    best = None
    for bt in range(1, B + 1):
        if B % bt:
            continue
        if B >= 2 and B // bt < 2:            # >= 2 parallel steps for v7x megacore
            continue
        if bt > 1 and bt * S > target_rows:   # amortize per-step overhead, no huge slabs
            continue
        if _vmem_bytes(bt, S, D, H, itemsize) > vmem_budget:
            continue
        if (bt * S) % 8 and bt != B:          # prefer sublane-aligned row counts
            continue
        best = bt
    return 1 if best is None else best


def multihead_self_attention(x, in_proj_weight, in_proj_bias,
                             out_proj_weight, out_proj_bias, *,
                             num_heads, block_batch=None):
    B, S, D = x.shape
    H = num_heads
    assert D % H == 0
    hd = D // H
    cdt = x.dtype
    itemsize = x.dtype.itemsize

    # ---- host-side layout plumbing (cheap XLA ops, not kernel work) ----
    # torch: qkv = x @ in_proj_weight.T + in_proj_bias ; columns of W^T laid out [q|k|v],
    # each part head-major.  Re-pack to head-major weights so the kernel never slices heads.
    scale = 1.0 / float(hd) ** 0.5
    w_in = in_proj_weight.T.reshape(D, 3, H, hd).transpose(1, 2, 0, 3)   # (3, H, D, hd)
    wq = (w_in[0] * scale).astype(cdt)       # fold 1/sqrt(hd) into Q weights
    wk = w_in[1].astype(cdt)
    wv = w_in[2].astype(cdt)
    b_in = in_proj_bias.reshape(3, H, 1, hd).astype(jnp.float32)
    bq = b_in[0] * scale                     # ... and into the Q bias
    bk = b_in[1]
    bv = b_in[2]
    wo = out_proj_weight.T.reshape(H, hd, D).astype(cdt)                 # (H, hd, D)
    bo = out_proj_bias.reshape(1, D).astype(jnp.float32)

    Bt = _pick_batch_block(B, S, D, H, itemsize) if block_batch is None else block_batch
    assert B % Bt == 0
    vmem_limit = int(min(max(2 * _vmem_bytes(Bt, S, D, H, itemsize), 32 << 20), 48 << 20))

    out = pl.pallas_call(
        mha_kernel,
        out_shape=jax.ShapeDtypeStruct((B, S, D), cdt),
        grid=(B // Bt, H),
        in_specs=[
            # x slab: block index constant over the head axis -> DMA'd once per batch block.
            pl.BlockSpec((Bt, S, D), lambda b, h: (b, 0, 0)),
            # head-major weights / biases: constant index map -> fetched once, stay resident.
            pl.BlockSpec((H, D, hd), lambda b, h: (0, 0, 0)),   # wq (scale folded in)
            pl.BlockSpec((H, D, hd), lambda b, h: (0, 0, 0)),   # wk
            pl.BlockSpec((H, D, hd), lambda b, h: (0, 0, 0)),   # wv
            pl.BlockSpec((H, 1, hd), lambda b, h: (0, 0, 0)),   # bq (scale folded in)
            pl.BlockSpec((H, 1, hd), lambda b, h: (0, 0, 0)),   # bk
            pl.BlockSpec((H, 1, hd), lambda b, h: (0, 0, 0)),   # bv
            pl.BlockSpec((H, hd, D), lambda b, h: (0, 0, 0)),   # wo^T, head-major
            pl.BlockSpec((1, D), lambda b, h: (0, 0)),          # bo
        ],
        out_specs=pl.BlockSpec((Bt, S, D), lambda b, h: (b, 0, 0)),
        scratch_shapes=[pltpu.VMEM((Bt * S, D), jnp.float32)],
        compiler_params=pltpu.CompilerParams(
            dimension_semantics=("parallel", "arbitrary"),
            vmem_limit_bytes=vmem_limit,
        ),
    )(x, wq, wk, wv, bq, bk, bv, wo, bo)
    return out


def mha_reference(x, in_proj_weight, in_proj_bias, out_proj_weight, out_proj_bias, num_heads):
    """Plain-JAX reference mirroring torch.nn.MultiheadAttention (eval mode)."""
    B, S, D = x.shape
    hd = D // num_heads
    qkv = jnp.einsum('bsd,ed->bse', x, in_proj_weight) + in_proj_bias
    q, k, v = qkv[..., :D], qkv[..., D:2 * D], qkv[..., 2 * D:]

    def split(t):  # (B, S, D) -> (B, H, S, hd)
        return t.reshape(B, S, num_heads, hd).transpose(0, 2, 1, 3)

    q, k, v = split(q), split(k), split(v)
    s = jnp.einsum('bhqd,bhkd->bhqk', q, k) / (hd ** 0.5)
    p = jax.nn.softmax(s, axis=-1)
    o = jnp.einsum('bhqk,bhkd->bhqd', p, v)
    o = o.transpose(0, 2, 1, 3).reshape(B, S, D)
    return jnp.einsum('bsd,ed->bse', o, out_proj_weight) + out_proj_bias


if __name__ == "__main__":
    B, S, D, H = 2, 8, 32, 4

    key = jax.random.PRNGKey(0)
    k_x, k_win, k_bin, k_wout, k_bout = jax.random.split(key, 5)

    x = jax.random.normal(k_x, (B, S, D), dtype=jnp.float32)
    # deterministic synthetic parameters (shapes match nn.MultiheadAttention internals)
    in_proj_weight = jax.random.normal(k_win, (3 * D, D), dtype=jnp.float32) * (1.0 / D ** 0.5)
    in_proj_bias = jax.random.normal(k_bin, (3 * D,), dtype=jnp.float32) * 0.01
    out_proj_weight = jax.random.normal(k_wout, (D, D), dtype=jnp.float32) * (1.0 / D ** 0.5)
    out_proj_bias = jax.random.normal(k_bout, (D,), dtype=jnp.float32) * 0.01

    out = multihead_self_attention(
        x, in_proj_weight, in_proj_bias, out_proj_weight, out_proj_bias, num_heads=H)
    out = jax.block_until_ready(out)

    ref = mha_reference(x, in_proj_weight, in_proj_bias, out_proj_weight, out_proj_bias, H)
    assert out.shape == (B, S, D)
    # Softmax reciprocal is exact now; the tolerance only absorbs TPU matmul pass-precision
    # differences between the MXU kernel and the default-precision XLA reference.
    assert jnp.allclose(out, ref, atol=2e-3, rtol=2e-3), "mismatch vs JAX reference"

    print("KERNEL_OK")
</pallas_src>

<mosaic_0001>
module attributes {stable_mosaic.version = 11 : i64} {
  func.func @mha_kernel(%arg0: i32, %arg1: i32, %arg2: memref<1x8x32xf32, #tpu.memory_space<vmem>>, %arg3: memref<4x32x8xf32, #tpu.memory_space<vmem>>, %arg4: memref<4x32x8xf32, #tpu.memory_space<vmem>>, %arg5: memref<4x32x8xf32, #tpu.memory_space<vmem>>, %arg6: memref<4x1x8xf32, #tpu.memory_space<vmem>>, %arg7: memref<4x1x8xf32, #tpu.memory_space<vmem>>, %arg8: memref<4x1x8xf32, #tpu.memory_space<vmem>>, %arg9: memref<4x8x32xf32, #tpu.memory_space<vmem>>, %arg10: memref<1x32xf32, #tpu.memory_space<vmem>>, %arg11: memref<1x8x32xf32, #tpu.memory_space<vmem>>, %arg12: memref<8x32xf32, #tpu.memory_space<vmem>>) attributes {dimension_semantics = [#tpu.dimension_semantics<parallel>, #tpu.dimension_semantics<arbitrary>], iteration_bounds = array<i64: 2, 4>, scalar_prefetch = 0 : i64, scratch_operands = 1 : i64, tpu.core_type = #tpu.core_type<tc>, window_params = [{transform_indices = @transform_0, window_bounds = array<i64: 1, 8, 32>}, {pipeline_mode = #tpu.pipeline_mode<synchronous>, transform_indices = @transform_1, window_bounds = array<i64: 4, 32, 8>}, {pipeline_mode = #tpu.pipeline_mode<synchronous>, transform_indices = @transform_2, window_bounds = array<i64: 4, 32, 8>}, {pipeline_mode = #tpu.pipeline_mode<synchronous>, transform_indices = @transform_3, window_bounds = array<i64: 4, 32, 8>}, {pipeline_mode = #tpu.pipeline_mode<synchronous>, transform_indices = @transform_4, window_bounds = array<i64: 4, 1, 8>}, {pipeline_mode = #tpu.pipeline_mode<synchronous>, transform_indices = @transform_5, window_bounds = array<i64: 4, 1, 8>}, {pipeline_mode = #tpu.pipeline_mode<synchronous>, transform_indices = @transform_6, window_bounds = array<i64: 4, 1, 8>}, {pipeline_mode = #tpu.pipeline_mode<synchronous>, transform_indices = @transform_7, window_bounds = array<i64: 4, 8, 32>}, {pipeline_mode = #tpu.pipeline_mode<synchronous>, transform_indices = @transform_8, window_bounds = array<i64: 1, 32>}, {transform_indices = @transform_9, window_bounds = array<i64: 1, 8, 32>}]} {
    %c0_i32 = arith.constant 0 : i32
    %0 = arith.cmpi eq, %arg1, %c0_i32 : i32
    %1 = arith.extui %0 : i1 to i32
    %c0_i32_0 = arith.constant 0 : i32
    %2 = arith.cmpi ne, %1, %c0_i32_0 : i32
    scf.if %2 {
      %cst_29 = arith.constant 0.000000e+00 : f32
      %58 = vector.broadcast %cst_29 : f32 to vector<8x32xf32>
      %c0_30 = arith.constant 0 : index
      %c0_31 = arith.constant 0 : index
      %59 = vector.load %arg12[%c0_30, %c0_31] : memref<8x32xf32, #tpu.memory_space<vmem>>, vector<8x32xf32>
      tpu.vector_store %arg12[%c0_30, %c0_31], %58 {strides = array<i32>} : memref<8x32xf32, #tpu.memory_space<vmem>>, vector<8x32xf32>,
    } else {
    }
    %c0 = arith.constant 0 : index
    %c0_1 = arith.constant 0 : index
    %c0_2 = arith.constant 0 : index
    %3 = vector.load %arg2[%c0, %c0_1, %c0_2] : memref<1x8x32xf32, #tpu.memory_space<vmem>>, vector<1x8x32xf32>
    %4 = vector.shape_cast %3 : vector<1x8x32xf32> to vector<8x32xf32>
    %5 = arith.index_cast %arg1 : i32 to index
    %c0_3 = arith.constant 0 : index
    %c0_4 = arith.constant 0 : index
    %6 = vector.load %arg3[%5, %c0_3, %c0_4] : memref<4x32x8xf32, #tpu.memory_space<vmem>>, vector<1x32x8xf32>
    %7 = vector.shape_cast %6 : vector<1x32x8xf32> to vector<32x8xf32>
    %cst = arith.constant dense<0.000000e+00> : vector<8x8xf32>
    %8 = tpu.matmul %4, %7, %cst {dimension_numbers = #tpu.dot_dimension_numbers<[1], [0], [0], [1], [0, 0, 1, 1], [], []>} : vector<8x32xf32>, vector<32x8xf32>, vector<8x8xf32> -> vector<8x8xf32>
    %9 = arith.index_cast %arg1 : i32 to index
    %c0_5 = arith.constant 0 : index
    %c0_6 = arith.constant 0 : index
    %10 = vector.load %arg6[%9, %c0_5, %c0_6] : memref<4x1x8xf32, #tpu.memory_space<vmem>>, vector<1x1x8xf32>
    %11 = vector.shape_cast %10 : vector<1x1x8xf32> to vector<1x8xf32>
    %12 = vector.broadcast %11 : vector<1x8xf32> to vector<8x8xf32>
    %13 = arith.addf %8, %12 : vector<8x8xf32>
    %14 = arith.index_cast %arg1 : i32 to index
    %c0_7 = arith.constant 0 : index
    %c0_8 = arith.constant 0 : index
    %15 = vector.load %arg4[%14, %c0_7, %c0_8] : memref<4x32x8xf32, #tpu.memory_space<vmem>>, vector<1x32x8xf32>
    %16 = vector.shape_cast %15 : vector<1x32x8xf32> to vector<32x8xf32>
    %cst_9 = arith.constant dense<0.000000e+00> : vector<8x8xf32>
    %17 = tpu.matmul %4, %16, %cst_9 {dimension_numbers = #tpu.dot_dimension_numbers<[1], [0], [0], [1], [0, 0, 1, 1], [], []>} : vector<8x32xf32>, vector<32x8xf32>, vector<8x8xf32> -> vector<8x8xf32>
    %18 = arith.index_cast %arg1 : i32 to index
    %c0_10 = arith.constant 0 : index
    %c0_11 = arith.constant 0 : index
    %19 = vector.load %arg7[%18, %c0_10, %c0_11] : memref<4x1x8xf32, #tpu.memory_space<vmem>>, vector<1x1x8xf32>
    %20 = vector.shape_cast %19 : vector<1x1x8xf32> to vector<1x8xf32>
    %21 = vector.broadcast %20 : vector<1x8xf32> to vector<8x8xf32>
    %22 = arith.addf %17, %21 : vector<8x8xf32>
    %23 = arith.index_cast %arg1 : i32 to index
    %c0_12 = arith.constant 0 : index
    %c0_13 = arith.constant 0 : index
    %24 = vector.load %arg5[%23, %c0_12, %c0_13] : memref<4x32x8xf32, #tpu.memory_space<vmem>>, vector<1x32x8xf32>
    %25 = vector.shape_cast %24 : vector<1x32x8xf32> to vector<32x8xf32>
    %cst_14 = arith.constant dense<0.000000e+00> : vector<8x8xf32>
    %26 = tpu.matmul %4, %25, %cst_14 {dimension_numbers = #tpu.dot_dimension_numbers<[1], [0], [0], [1], [0, 0, 1, 1], [], []>} : vector<8x32xf32>, vector<32x8xf32>, vector<8x8xf32> -> vector<8x8xf32>
    %27 = arith.index_cast %arg1 : i32 to index
    %c0_15 = arith.constant 0 : index
    %c0_16 = arith.constant 0 : index
    %28 = vector.load %arg8[%27, %c0_15, %c0_16] : memref<4x1x8xf32, #tpu.memory_space<vmem>>, vector<1x1x8xf32>
    %29 = vector.shape_cast %28 : vector<1x1x8xf32> to vector<1x8xf32>
    %30 = vector.broadcast %29 : vector<1x8xf32> to vector<8x8xf32>
    %31 = arith.addf %26, %30 : vector<8x8xf32>
    %32 = vector.shape_cast %13 : vector<8x8xf32> to vector<1x8x8xf32>
    %33 = vector.shape_cast %22 : vector<8x8xf32> to vector<1x8x8xf32>
    %34 = vector.shape_cast %31 : vector<8x8xf32> to vector<1x8x8xf32>
    "tpu.trace_start"() <{level = 10 : i32, message = "bqe,bke->bqk"}> : () -> ()
    %cst_17 = arith.constant dense<0.000000e+00> : vector<1x8x8xf32>
    %35 = tpu.matmul %32, %33, %cst_17 {dimension_numbers = #tpu.dot_dimension_numbers<[2], [2], [1], [1], [0, 0, 0, 1, 1, 1], [0], [0]>} : vector<1x8x8xf32>, vector<1x8x8xf32>, vector<1x8x8xf32> -> vector<1x8x8xf32>
    "tpu.trace_stop"() : () -> ()
    %cst_18 = arith.constant dense<0xFF800000> : vector<1x8xf32>
    %36 = vector.multi_reduction <maximumf>, %35, %cst_18 [2] : vector<1x8x8xf32> to vector<1x8xf32>
    %37 = vector.shape_cast %36 : vector<1x8xf32> to vector<1x8x1xf32>
    %38 = vector.broadcast %37 : vector<1x8x1xf32> to vector<1x8x8xf32>
    %39 = arith.subf %35, %38 : vector<1x8x8xf32>
    %40 = math.exp %39 : vector<1x8x8xf32>
    %cst_19 = arith.constant dense<0.000000e+00> : vector<1x8xf32>
    %41 = vector.multi_reduction <add>, %40, %cst_19 [2] : vector<1x8x8xf32> to vector<1x8xf32>
    %42 = vector.shape_cast %41 : vector<1x8xf32> to vector<1x8x1xf32>
    %43 = tpu.reciprocal %42 : vector<1x8x1xf32> -> vector<1x8x1xf32>
    %44 = vector.broadcast %43 : vector<1x8x1xf32> to vector<1x8x8xf32>
    %45 = arith.mulf %40, %44 : vector<1x8x8xf32>
    "tpu.trace_start"() <{level = 10 : i32, message = "bqk,bke->bqe"}> : () -> ()
    %cst_20 = arith.constant dense<0.000000e+00> : vector<1x8x8xf32>
    %46 = tpu.matmul %45, %34, %cst_20 {dimension_numbers = #tpu.dot_dimension_numbers<[2], [1], [1], [2], [0, 0, 0, 1, 1, 2], [0], [0]>} : vector<1x8x8xf32>, vector<1x8x8xf32>, vector<1x8x8xf32> -> vector<1x8x8xf32>
    "tpu.trace_stop"() : () -> ()
    %47 = vector.shape_cast %46 : vector<1x8x8xf32> to vector<8x8xf32>
    %c0_21 = arith.constant 0 : index
    %c0_22 = arith.constant 0 : index
    %48 = vector.load %arg12[%c0_21, %c0_22] : memref<8x32xf32, #tpu.memory_space<vmem>>, vector<8x32xf32>
    %49 = arith.index_cast %arg1 : i32 to index
    %c0_23 = arith.constant 0 : index
    %c0_24 = arith.constant 0 : index
    %50 = vector.load %arg9[%49, %c0_23, %c0_24] : memref<4x8x32xf32, #tpu.memory_space<vmem>>, vector<1x8x32xf32>
    %51 = vector.shape_cast %50 : vector<1x8x32xf32> to vector<8x32xf32>
    %cst_25 = arith.constant dense<0.000000e+00> : vector<8x32xf32>
    %52 = tpu.matmul %47, %51, %cst_25 {dimension_numbers = #tpu.dot_dimension_numbers<[1], [0], [0], [1], [0, 0, 1, 1], [], []>} : vector<8x8xf32>, vector<8x32xf32>, vector<8x32xf32> -> vector<8x32xf32>
    %53 = arith.addf %48, %52 : vector<8x32xf32>
    %c0_26 = arith.constant 0 : index
    %c0_27 = arith.constant 0 : index
    %54 = vector.load %arg12[%c0_26, %c0_27] : memref<8x32xf32, #tpu.memory_space<vmem>>, vector<8x32xf32>
    tpu.vector_store %arg12[%c0_26, %c0_27], %53 {strides = array<i32>} : memref<8x32xf32, #tpu.memory_space<vmem>>, vector<8x32xf32>,
    %c3_i32 = arith.constant 3 : i32
    %55 = arith.cmpi eq, %arg1, %c3_i32 : i32
    %56 = arith.extui %55 : i1 to i32
    %c0_i32_28 = arith.constant 0 : i32
    %57 = arith.cmpi ne, %56, %c0_i32_28 : i32
    scf.if %57 {
      %c0_29 = arith.constant 0 : index
      %c0_30 = arith.constant 0 : index
      %58 = vector.load %arg12[%c0_29, %c0_30] : memref<8x32xf32, #tpu.memory_space<vmem>>, vector<8x32xf32>
      %c0_31 = arith.constant 0 : index
      %c0_32 = arith.constant 0 : index
      %59 = vector.load %arg10[%c0_31, %c0_32] : memref<1x32xf32, #tpu.memory_space<vmem>>, vector<1x32xf32>
      %60 = vector.broadcast %59 : vector<1x32xf32> to vector<8x32xf32>
      %61 = arith.addf %58, %60 : vector<8x32xf32>
      %62 = vector.shape_cast %61 : vector<8x32xf32> to vector<1x8x32xf32>
      %c0_33 = arith.constant 0 : index
      %c0_34 = arith.constant 0 : index
      %c0_35 = arith.constant 0 : index
      %63 = vector.load %arg11[%c0_33, %c0_34, %c0_35] : memref<1x8x32xf32, #tpu.memory_space<vmem>>, vector<1x8x32xf32>
      tpu.vector_store %arg11[%c0_33, %c0_34, %c0_35], %62 {strides = array<i32>} : memref<1x8x32xf32, #tpu.memory_space<vmem>>, vector<1x8x32xf32>,
    } else {
    }
    return
  }
  func.func @transform_0(%arg0: i32, %arg1: i32) -> (i32, i32, i32) {
    %c0_i32 = arith.constant 0 : i32
    %c0_i32_0 = arith.constant 0 : i32
    %c0_i32_1 = arith.constant 0 : i32
    return %arg0, %c0_i32, %c0_i32_0 : i32, i32, i32
  }
  func.func @transform_1(%arg0: i32, %arg1: i32) -> (i32, i32, i32) {
    %c0_i32 = arith.constant 0 : i32
    %c0_i32_0 = arith.constant 0 : i32
    %c0_i32_1 = arith.constant 0 : i32
    %c0_i32_2 = arith.constant 0 : i32
    return %c0_i32, %c0_i32_0, %c0_i32_1 : i32, i32, i32
  }
  func.func @transform_2(%arg0: i32, %arg1: i32) -> (i32, i32, i32) {
    %c0_i32 = arith.constant 0 : i32
    %c0_i32_0 = arith.constant 0 : i32
    %c0_i32_1 = arith.constant 0 : i32
    %c0_i32_2 = arith.constant 0 : i32
    return %c0_i32, %c0_i32_0, %c0_i32_1 : i32, i32, i32
  }
  func.func @transform_3(%arg0: i32, %arg1: i32) -> (i32, i32, i32) {
    %c0_i32 = arith.constant 0 : i32
    %c0_i32_0 = arith.constant 0 : i32
    %c0_i32_1 = arith.constant 0 : i32
    %c0_i32_2 = arith.constant 0 : i32
    return %c0_i32, %c0_i32_0, %c0_i32_1 : i32, i32, i32
  }
  func.func @transform_4(%arg0: i32, %arg1: i32) -> (i32, i32, i32) {
    %c0_i32 = arith.constant 0 : i32
    %c0_i32_0 = arith.constant 0 : i32
    %c0_i32_1 = arith.constant 0 : i32
    %c0_i32_2 = arith.constant 0 : i32
    return %c0_i32, %c0_i32_0, %c0_i32_1 : i32, i32, i32
  }
  func.func @transform_5(%arg0: i32, %arg1: i32) -> (i32, i32, i32) {
    %c0_i32 = arith.constant 0 : i32
    %c0_i32_0 = arith.constant 0 : i32
    %c0_i32_1 = arith.constant 0 : i32
    %c0_i32_2 = arith.constant 0 : i32
    return %c0_i32, %c0_i32_0, %c0_i32_1 : i32, i32, i32
  }
  func.func @transform_6(%arg0: i32, %arg1: i32) -> (i32, i32, i32) {
    %c0_i32 = arith.constant 0 : i32
    %c0_i32_0 = arith.constant 0 : i32
    %c0_i32_1 = arith.constant 0 : i32
    %c0_i32_2 = arith.constant 0 : i32
    return %c0_i32, %c0_i32_0, %c0_i32_1 : i32, i32, i32
  }
  func.func @transform_7(%arg0: i32, %arg1: i32) -> (i32, i32, i32) {
    %c0_i32 = arith.constant 0 : i32
    %c0_i32_0 = arith.constant 0 : i32
    %c0_i32_1 = arith.constant 0 : i32
    %c0_i32_2 = arith.constant 0 : i32
    return %c0_i32, %c0_i32_0, %c0_i32_1 : i32, i32, i32
  }
  func.func @transform_8(%arg0: i32, %arg1: i32) -> (i32, i32) {
    %c0_i32 = arith.constant 0 : i32
    %c0_i32_0 = arith.constant 0 : i32
    %c0_i32_1 = arith.constant 0 : i32
    return %c0_i32, %c0_i32_0 : i32, i32
  }
  func.func @transform_9(%arg0: i32, %arg1: i32) -> (i32, i32, i32) {
    %c0_i32 = arith.constant 0 : i32
    %c0_i32_0 = arith.constant 0 : i32
    %c0_i32_1 = arith.constant 0 : i32
    return %arg0, %c0_i32, %c0_i32_0 : i32, i32, i32
  }
}

</mosaic_0001>

<llo_original>
// kernel: tpu_custom_call.1
$region0: #{tpu_custom_call.1}
  #allocation0 [shape = 'u32[]', space=smem, size = 0x4, offset = 0x4, fixed_abs, tag = 'smem constant byte address 0x4 - core index']
  #allocation1 [shape = 'u32[72,128]{1,0:T(1,128)}', space=vmem, size = 0x9000, scoped, tag = 'internal scratch']
  #allocation2 [shape = 'f32[8,32]{1,0:T(8,128)}', space=vmem, size = 0x1000, scoped, tag = 'scratch operand']
  %s0 = inlined_call_operand.vmem [shape: f32[2,8,32], index: 0, kind: input, shape index: {}]
  %s1 = inlined_call_operand.vmem [shape: f32[4,32,8], index: 1, kind: input, shape index: {}]
  %s2 = inlined_call_operand.vmem [shape: f32[4,32,8], index: 2, kind: input, shape index: {}]
  %s3 = inlined_call_operand.vmem [shape: f32[4,32,8], index: 3, kind: input, shape index: {}]
  %s4 = inlined_call_operand.vmem [shape: f32[4,1,8], index: 4, kind: input, shape index: {}]
  %s5 = inlined_call_operand.vmem [shape: f32[4,1,8], index: 5, kind: input, shape index: {}]
  %s6 = inlined_call_operand.vmem [shape: f32[4,1,8], index: 6, kind: input, shape index: {}]
  %s7 = inlined_call_operand.vmem [shape: f32[4,8,32], index: 7, kind: input, shape index: {}]
  %s8 = inlined_call_operand.vmem [shape: f32[1,32], index: 8, kind: input, shape index: {}]
  %s9 = inlined_call_operand.hbm [shape: f32[2,8,32], index: 9, kind: output, shape index: {}]
  %s10 = sld [smem:[#allocation0]]
  $region77: #{tpu_custom_call.1} parent=0
    _
  %s12 = ssub.s32 1, %s10
  %s13 = scalar_select 0, %s12, %s10
  $region1: #{tpu_custom_call.1} parent=0
    #allocation3 [shape = 'u8[8192]{0}', space=vmem, size = 0x2000, scoped, tag = 'output window, operand 0']
    #allocation4 [shape = 's32[2]{0}', space=sflag, size = 0x8, scoped, tag = 'scoped memory for tpu_custom_call.1']
    %14 = vsyncpa [#allocation4], 0
    %s15 = scalar_lea.sflag [#allocation4], 1
    %16 = vsyncpa %s15, 0
    loop: start=0, step=1, limit=10
    $region2: #{tpu_custom_call.1} parent=1 // loop_pre_header
      _
    $region3: #{tpu_custom_call.1} parent=1 // loop_header
      %s18 = sphi 0, %s22
      %p19 = scmp.ge.s32.totalorder %s18, 10
      %s25 = sphi 0, %s37
      %s26 = sphi 0, %s33
      %s27 = sphi 0, %s25
      %s28 = sphi 0, %s26
      %s29 = sphi 0, %s27
      %s30 = sphi 0, %s28
      %s40 = sphi 0, %s42
      %s43 = sphi 0, %s40
      %s44 = sphi 0, %s43
      %s60 = sphi 0, %s44
      %s64 = sphi 0, %s64
      %s66 = sphi 0, %s64
      %s67 = sphi 0, %s66
      %s81 = sphi 0, %s67
      %s85 = sphi 0, %s85
      %s87 = sphi 0, %s85
      %s88 = sphi 0, %s87
      %s102 = sphi 0, %s88
      %s106 = sphi 0, %s106
      %s108 = sphi 0, %s106
      %s109 = sphi 0, %s108
      %s123 = sphi 0, %s109
      %s127 = sphi 0, %s127
      %s129 = sphi 0, %s127
      %s130 = sphi 0, %s129
      %s144 = sphi 0, %s130
      %s148 = sphi 0, %s148
      %s150 = sphi 0, %s148
      %s151 = sphi 0, %s150
      %s165 = sphi 0, %s151
      %s169 = sphi 0, %s169
      %s171 = sphi 0, %s169
      %s172 = sphi 0, %s171
      %s186 = sphi 0, %s172
      %s190 = sphi 0, %s190
      %s192 = sphi 0, %s190
      %s193 = sphi 0, %s192
      %s207 = sphi 0, %s193
      %s211 = sphi 0, %s211
      %s213 = sphi 0, %s211
      %s214 = sphi 0, %s213
      %s228 = sphi 0, %s214
      %s234 = sphi 0, %s236
      %s237 = sphi 0, %s234
      %s238 = sphi 0, %s237
      %s254 = sphi 0, %s238
    $region4: #{tpu_custom_call.1} parent=1 // loop_header_branch
      %21 = sbr.rel (%p19) target = $region8
    $region5: #{tpu_custom_call.1} parent=1 // loop_body
      %s23 = ssub.s32 %s18, 1
      %s24 = ssub.s32 %s18, 2
      %s31 = sadd.s32 1, %s26
      %p32 = scmp.ge.s32.totalorder %s31, 4
      %s33 = scalar_select %p32, 0, %s31
      %s34 = sadd.s32 1, %s25
      %s35 = scalar_select %p32, %s34, %s25
      %p36 = scmp.ge.s32.totalorder %s35, 2
      %s37 = scalar_select %p36, 0, %s35
      %s38 = ssub.s32 %s25, %s37
      %p39 = scmp.eq.s32.totalorder %s38, 0
      %s41 = sadd.s32 %s40, 1
      %s42 = scalar_select %p39, %s40, %s41
      %p45 = pneg %p39
      %p46 = scmp.eq.s32.totalorder %s18, 7
      %p47 = por %p45, %p46
      %p48 = scmp.ne.s32.totalorder %s40, %s43
      %p49 = scmp.eq.s32.totalorder %s18, 0
      %p50 = por %p48, %p49
      %p51 = scmp.ne.s32.totalorder %s40, %s43
      %p52 = scmp.eq.s32.totalorder %s23, 7
      %p53 = por %p51, %p52
      %p54 = scmp.ne.s32.totalorder %s43, %s44
      %p55 = scmp.eq.s32.totalorder %s23, 0
      %p56 = por %p54, %p55
      %p57 = scmp.ne.s32.totalorder %s43, %s44
      %p58 = scmp.eq.s32.totalorder %s24, 7
      %p59 = por %p57, %p58
      %p61 = scmp.ne.s32.totalorder %s44, %s60
      %p62 = scmp.eq.s32.totalorder %s24, 0
      %p63 = por %p61, %p62
      %s65 = sadd.s32 %s64, 1
      %p68 = scmp.eq.s32.totalorder %s18, 7
      %p69 = scmp.ne.s32.totalorder %s64, %s66
      %p70 = scmp.eq.s32.totalorder %s18, 0
      %p71 = por %p69, %p70
      %p72 = scmp.ne.s32.totalorder %s64, %s66
      %p73 = scmp.eq.s32.totalorder %s23, 7
      %p74 = por %p72, %p73
      %p75 = scmp.ne.s32.totalorder %s66, %s67
      %p76 = scmp.eq.s32.totalorder %s23, 0
      %p77 = por %p75, %p76
      %p78 = scmp.ne.s32.totalorder %s66, %s67
      %p79 = scmp.eq.s32.totalorder %s24, 7
      %p80 = por %p78, %p79
      %p82 = scmp.ne.s32.totalorder %s67, %s81
      %p83 = scmp.eq.s32.totalorder %s24, 0
      %p84 = por %p82, %p83
      %s86 = sadd.s32 %s85, 1
      %p89 = scmp.eq.s32.totalorder %s18, 7
      %p90 = scmp.ne.s32.totalorder %s85, %s87
      %p91 = scmp.eq.s32.totalorder %s18, 0
      %p92 = por %p90, %p91
      %p93 = scmp.ne.s32.totalorder %s85, %s87
      %p94 = scmp.eq.s32.totalorder %s23, 7
      %p95 = por %p93, %p94
      %p96 = scmp.ne.s32.totalorder %s87, %s88
      %p97 = scmp.eq.s32.totalorder %s23, 0
      %p98 = por %p96, %p97
      %p99 = scmp.ne.s32.totalorder %s87, %s88
      %p100 = scmp.eq.s32.totalorder %s24, 7
      %p101 = por %p99, %p100
      %p103 = scmp.ne.s32.totalorder %s88, %s102
      %p104 = scmp.eq.s32.totalorder %s24, 0
      %p105 = por %p103, %p104
      %s107 = sadd.s32 %s106, 1
      %p110 = scmp.eq.s32.totalorder %s18, 7
      %p111 = scmp.ne.s32.totalorder %s106, %s108
      %p112 = scmp.eq.s32.totalorder %s18, 0
      %p113 = por %p111, %p112
      %p114 = scmp.ne.s32.totalorder %s106, %s108
      %p115 = scmp.eq.s32.totalorder %s23, 7
      %p116 = por %p114, %p115
      %p117 = scmp.ne.s32.totalorder %s108, %s109
      %p118 = scmp.eq.s32.totalorder %s23, 0
      %p119 = por %p117, %p118
      %p120 = scmp.ne.s32.totalorder %s108, %s109
      %p121 = scmp.eq.s32.totalorder %s24, 7
      %p122 = por %p120, %p121
      %p124 = scmp.ne.s32.totalorder %s109, %s123
      %p125 = scmp.eq.s32.totalorder %s24, 0
      %p126 = por %p124, %p125
      %s128 = sadd.s32 %s127, 1
      %p131 = scmp.eq.s32.totalorder %s18, 7
      %p132 = scmp.ne.s32.totalorder %s127, %s129
      %p133 = scmp.eq.s32.totalorder %s18, 0
      %p134 = por %p132, %p133
      %p135 = scmp.ne.s32.totalorder %s127, %s129
      %p136 = scmp.eq.s32.totalorder %s23, 7
      %p137 = por %p135, %p136
      %p138 = scmp.ne.s32.totalorder %s129, %s130
      %p139 = scmp.eq.s32.totalorder %s23, 0
      %p140 = por %p138, %p139
      %p141 = scmp.ne.s32.totalorder %s129, %s130
      %p142 = scmp.eq.s32.totalorder %s24, 7
      %p143 = por %p141, %p142
      %p145 = scmp.ne.s32.totalorder %s130, %s144
      %p146 = scmp.eq.s32.totalorder %s24, 0
      %p147 = por %p145, %p146
      %s149 = sadd.s32 %s148, 1
      %p152 = scmp.eq.s32.totalorder %s18, 7
      %p153 = scmp.ne.s32.totalorder %s148, %s150
      %p154 = scmp.eq.s32.totalorder %s18, 0
      %p155 = por %p153, %p154
      %p156 = scmp.ne.s32.totalorder %s148, %s150
      %p157 = scmp.eq.s32.totalorder %s23, 7
      %p158 = por %p156, %p157
      %p159 = scmp.ne.s32.totalorder %s150, %s151
      %p160 = scmp.eq.s32.totalorder %s23, 0
      %p161 = por %p159, %p160
      %p162 = scmp.ne.s32.totalorder %s150, %s151
      %p163 = scmp.eq.s32.totalorder %s24, 7
      %p164 = por %p162, %p163
      %p166 = scmp.ne.s32.totalorder %s151, %s165
      %p167 = scmp.eq.s32.totalorder %s24, 0
      %p168 = por %p166, %p167
      %s170 = sadd.s32 %s169, 1
      %p173 = scmp.eq.s32.totalorder %s18, 7
      %p174 = scmp.ne.s32.totalorder %s169, %s171
      %p175 = scmp.eq.s32.totalorder %s18, 0
      %p176 = por %p174, %p175
      %p177 = scmp.ne.s32.totalorder %s169, %s171
      %p178 = scmp.eq.s32.totalorder %s23, 7
      %p179 = por %p177, %p178
      %p180 = scmp.ne.s32.totalorder %s171, %s172
      %p181 = scmp.eq.s32.totalorder %s23, 0
      %p182 = por %p180, %p181
      %p183 = scmp.ne.s32.totalorder %s171, %s172
      %p184 = scmp.eq.s32.totalorder %s24, 7
      %p185 = por %p183, %p184
      %p187 = scmp.ne.s32.totalorder %s172, %s186
      %p188 = scmp.eq.s32.totalorder %s24, 0
      %p189 = por %p187, %p188
      %s191 = sadd.s32 %s190, 1
      %p194 = scmp.eq.s32.totalorder %s18, 7
      %p195 = scmp.ne.s32.totalorder %s190, %s192
      %p196 = scmp.eq.s32.totalorder %s18, 0
      %p197 = por %p195, %p196
      %p198 = scmp.ne.s32.totalorder %s190, %s192
      %p199 = scmp.eq.s32.totalorder %s23, 7
      %p200 = por %p198, %p199
      %p201 = scmp.ne.s32.totalorder %s192, %s193
      %p202 = scmp.eq.s32.totalorder %s23, 0
      %p203 = por %p201, %p202
      %p204 = scmp.ne.s32.totalorder %s192, %s193
      %p205 = scmp.eq.s32.totalorder %s24, 7
      %p206 = por %p204, %p205
      %p208 = scmp.ne.s32.totalorder %s193, %s207
      %p209 = scmp.eq.s32.totalorder %s24, 0
      %p210 = por %p208, %p209
      %s212 = sadd.s32 %s211, 1
      %p215 = scmp.eq.s32.totalorder %s18, 7
      %p216 = scmp.ne.s32.totalorder %s211, %s213
      %p217 = scmp.eq.s32.totalorder %s18, 0
      %p218 = por %p216, %p217
      %p219 = scmp.ne.s32.totalorder %s211, %s213
      %p220 = scmp.eq.s32.totalorder %s23, 7
      %p221 = por %p219, %p220
      %p222 = scmp.ne.s32.totalorder %s213, %s214
      %p223 = scmp.eq.s32.totalorder %s23, 0
      %p224 = por %p222, %p223
      %p225 = scmp.ne.s32.totalorder %s213, %s214
      %p226 = scmp.eq.s32.totalorder %s24, 7
      %p227 = por %p225, %p226
      %p229 = scmp.ne.s32.totalorder %s214, %s228
      %p230 = scmp.eq.s32.totalorder %s24, 0
      %p231 = por %p229, %p230
      %s232 = ssub.s32 %s25, %s37
      %p233 = scmp.eq.s32.totalorder %s232, 0
      %s235 = sadd.s32 %s234, 1
      %s236 = scalar_select %p233, %s234, %s235
      %p239 = pneg %p233
      %p240 = scmp.eq.s32.totalorder %s18, 7
      %p241 = por %p239, %p240
      %p242 = scmp.ne.s32.totalorder %s234, %s237
      %p243 = scmp.eq.s32.totalorder %s18, 0
      %p244 = por %p242, %p243
      %p245 = scmp.ne.s32.totalorder %s234, %s237
      %p246 = scmp.eq.s32.totalorder %s23, 7
      %p247 = por %p245, %p246
      %p248 = scmp.ne.s32.totalorder %s237, %s238
      %p249 = scmp.eq.s32.totalorder %s23, 0
      %p250 = por %p248, %p249
      %p251 = scmp.ne.s32.totalorder %s237, %s238
      %p252 = scmp.eq.s32.totalorder %s24, 7
      %p253 = por %p251, %p252
      %p255 = scmp.ne.s32.totalorder %s238, %s254
      %p256 = scmp.eq.s32.totalorder %s24, 0
      %p257 = por %p255, %p256
      %p258 = scmp.le.s32.totalorder 1, %s18
      %p259 = scmp.lt.s32.totalorder %s18, 9
      %p260 = pnand %p258, %p259
      %p261 = pneg %p260
      // Predicated region
      $region9: #{tpu_custom_call.1} parent=5 // pred_check
        _
      $region10: #{tpu_custom_call.1} parent=5 // pred_check_branch
        %263 = sbr.rel (%p260) target = $region12
      $region11: #{tpu_custom_call.1} parent=5 // pred_region
        %s264 = ssub.s32 %s18, 1
        // Predicated region
        $region13: #{tpu_custom_call.1} parent=11 // pred_check
          %p265 = pneg %p77
        $region14: #{tpu_custom_call.1} parent=11 // pred_check_branch
          %267 = sbr.rel (%p265) target = $region16
        $region15: #{tpu_custom_call.1} parent=11 // pred_region
          _
        $region16: #{tpu_custom_call.1} parent=11 // pred_fallthru
          _
        // Predicated region
        $region17: #{tpu_custom_call.1} parent=11 // pred_check
          %p268 = pneg %p98
        $region18: #{tpu_custom_call.1} parent=11 // pred_check_branch
          %270 = sbr.rel (%p268) target = $region20
        $region19: #{tpu_custom_call.1} parent=11 // pred_region
          _
        $region20: #{tpu_custom_call.1} parent=11 // pred_fallthru
          _
        // Predicated region
        $region21: #{tpu_custom_call.1} parent=11 // pred_check
          %p271 = pneg %p119
        $region22: #{tpu_custom_call.1} parent=11 // pred_check_branch
          %273 = sbr.rel (%p271) target = $region24
        $region23: #{tpu_custom_call.1} parent=11 // pred_region
          _
        $region24: #{tpu_custom_call.1} parent=11 // pred_fallthru
          _
        // Predicated region
        $region25: #{tpu_custom_call.1} parent=11 // pred_check
          %p274 = pneg %p140
        $region26: #{tpu_custom_call.1} parent=11 // pred_check_branch
          %276 = sbr.rel (%p274) target = $region28
        $region27: #{tpu_custom_call.1} parent=11 // pred_region
          _
        $region28: #{tpu_custom_call.1} parent=11 // pred_fallthru
          _
        // Predicated region
        $region29: #{tpu_custom_call.1} parent=11 // pred_check
          %p277 = pneg %p161
        $region30: #{tpu_custom_call.1} parent=11 // pred_check_branch
          %279 = sbr.rel (%p277) target = $region32
        $region31: #{tpu_custom_call.1} parent=11 // pred_region
          _
        $region32: #{tpu_custom_call.1} parent=11 // pred_fallthru
          _
        // Predicated region
        $region33: #{tpu_custom_call.1} parent=11 // pred_check
          %p280 = pneg %p182
        $region34: #{tpu_custom_call.1} parent=11 // pred_check_branch
          %282 = sbr.rel (%p280) target = $region36
        $region35: #{tpu_custom_call.1} parent=11 // pred_region
          _
        $region36: #{tpu_custom_call.1} parent=11 // pred_fallthru
          _
        // Predicated region
        $region37: #{tpu_custom_call.1} parent=11 // pred_check
          %p283 = pneg %p203
        $region38: #{tpu_custom_call.1} parent=11 // pred_check_branch
          %285 = sbr.rel (%p283) target = $region40
        $region39: #{tpu_custom_call.1} parent=11 // pred_region
          _
        $region40: #{tpu_custom_call.1} parent=11 // pred_fallthru
          _
        // Predicated region
        $region41: #{tpu_custom_call.1} parent=11 // pred_check
          %p286 = pneg %p224
        $region42: #{tpu_custom_call.1} parent=11 // pred_check_branch
          %288 = sbr.rel (%p286) target = $region44
        $region43: #{tpu_custom_call.1} parent=11 // pred_region
          _
        $region44: #{tpu_custom_call.1} parent=11 // pred_fallthru
          _
      $region12: #{tpu_custom_call.1} parent=5 // pred_fallthru
        _
      %p289 = scmp.lt.s32.totalorder %s18, 8
      // Predicated region
      $region45: #{tpu_custom_call.1} parent=5 // pred_check
        %p290 = pneg %p289
      $region46: #{tpu_custom_call.1} parent=5 // pred_check_branch
        %292 = sbr.rel (%p290) target = $region48
      $region47: #{tpu_custom_call.1} parent=5 // pred_region
        // Predicated region
        $region49: #{tpu_custom_call.1} parent=47 // pred_check
          %p293 = pneg %p50
        $region50: #{tpu_custom_call.1} parent=47 // pred_check_branch
          %295 = sbr.rel (%p293) target = $region52
        $region51: #{tpu_custom_call.1} parent=47 // pred_region
          %p296 = scmp.lt.s32.totalorder %s25, 1
          %s297 = scalar_select %p296, %s25, 1
          %s298 = smul.addr %s297, 8
          %s299 = scalar_lea.vmem %s0, %s298
        $region52: #{tpu_custom_call.1} parent=47 // pred_fallthru
          _
      $region48: #{tpu_custom_call.1} parent=5 // pred_fallthru
        _
      %p300 = scmp.le.s32.totalorder 1, %s18
      %p301 = scmp.lt.s32.totalorder %s18, 9
      %p302 = pnand %p300, %p301
      %p303 = pneg %p302
      // Predicated region
      $region53: #{tpu_custom_call.1} parent=5 // pred_check
        _
      $region54: #{tpu_custom_call.1} parent=5 // pred_check_branch
        %305 = sbr.rel (%p302) target = $region56
      $region55: #{tpu_custom_call.1} parent=5 // pred_region
        %s306 = ssub.s32 %s18, 1
        %p307 = scmp.lt.s32.totalorder %s27, 1
        %s308 = scalar_select %p307, %s27, 1
        %s309 = smul.addr %s308, 8
        %s310 = scalar_lea.vmem %s0, %s309
        %p311 = pneg %p56
        %p312 = pneg %p53
        %p313 = pneg %p77
        %p314 = pneg %p74
        %p315 = pneg %p98
        %p316 = pneg %p95
        %p317 = pneg %p119
        %p318 = pneg %p116
        %p319 = pneg %p140
        %p320 = pneg %p137
        %p321 = pneg %p161
        %p322 = pneg %p158
        %p323 = pneg %p182
        %p324 = pneg %p179
        %p325 = pneg %p203
        %p326 = pneg %p200
        %p327 = pneg %p224
        %p328 = pneg %p221
        %p329 = pneg %p250
        %p330 = pneg %p247
        %s331 = sand.u32 %s237, 1
        %s332 = scalar_lea.sflag [#allocation4], %s331
        %s333 = sand.u32 %s237, 1
        %s334 = smul.addr %s333, 8
        %s335 = scalar_lea.vmem [#allocation3], %s334
        %p336 = scmp.lt.s32.totalorder %s27, 1
        %s337 = scalar_select %p336, %s27, 1
        %s338 = smul.addr %s337, 8
        %s339 = scalar_lea.vmem %s0, %s338
        %p340 = scmp.eq.s32.totalorder %s28, 0
        // Predicated region
        $region57: #{tpu_custom_call.1} parent=55 // pred_check
          %p341 = pneg %p340
        $region58: #{tpu_custom_call.1} parent=55 // pred_check_branch
          %343 = sbr.rel (%p341) target = $region60
        $region59: #{tpu_custom_call.1} parent=55 // pred_region
          %vm344 = vcmask 261120
          %345 = vst.msk [vmem:[#allocation2] sm:$0xff] %vm344, 0.0
        $region60: #{tpu_custom_call.1} parent=55 // pred_fallthru
          _
        %v346 = vld [vmem:[%s339] sm:$0xff]
        %s347 = smul.u32 %s28, 32
        %s348 = scalar_lea.vmem %s1, %s347
        %v349 = vld [vmem:[%s348] sm:$0xff]
        %v350 = vld [vmem:[%s348 + $0x8] sm:$0xff]
        %v351 = vld [vmem:[%s348 + $0x10] sm:$0xff]
        %v352 = vld [vmem:[%s348 + $0x18] sm:$0xff]
        %s353 = scalar_lea.vmem %s4, %s28
        %v354 = vld [vmem:[%s353] sm:$0x1]
        %v356 = vperm.slane %v354, 0
        %vm358 = vcmask 261120
        %v360 = vsel %vm358, %v346, 0
        %362 = vmatpush.msra.mxu0 0.0
        %363 = vmatpush.msra.mxu0 0.0
        %364 = vmatpush.msra.mxu0 0.0
        %365 = vmatpush.msra.mxu0 0.0
        %366 = vmatpush.msra.mxu0 0.0
        %367 = vmatpush.msra.mxu0 0.0
        %368 = vmatpush.msra.mxu0 0.0
        %369 = vmatpush.msra.mxu0 0.0
        %370 = vmatpush.msra.mxu0 0.0
        %371 = vmatpush.msra.mxu0 0.0
        %372 = vmatpush.msra.mxu0 0.0
        %373 = vmatpush.msra.mxu0 0.0
        %374 = vmatpush.msra.mxu0 %v352
        %375 = vmatpush.msra.mxu0 %v351
        %376 = vmatpush.msra.mxu0 %v350
        %377 = vmatpush.msra.mxu0 %v349
        %378 = vmatmul.f32.gmra.mxu0 %v360
        %v379 = vpop.f32.mrf.mxu0
        %v380 = vadd.f32 %v356, %v379
        %381 = vdwg.mxu0
        %s382 = scalar_lea.vmem %s2, %s347
        %v383 = vld [vmem:[%s382] sm:$0xff]
        %v384 = vld [vmem:[%s382 + $0x8] sm:$0xff]
        %v385 = vld [vmem:[%s382 + $0x10] sm:$0xff]
        %v386 = vld [vmem:[%s382 + $0x18] sm:$0xff]
        %s387 = scalar_lea.vmem %s5, %s28
        %v388 = vld [vmem:[%s387] sm:$0x1]
        %v390 = vperm.slane %v388, 0
        %392 = vmatpush.msra.mxu0 0.0
        %393 = vmatpush.msra.mxu0 0.0
        %394 = vmatpush.msra.mxu0 0.0
        %395 = vmatpush.msra.mxu0 0.0
        %396 = vmatpush.msra.mxu0 0.0
        %397 = vmatpush.msra.mxu0 0.0
        %398 = vmatpush.msra.mxu0 0.0
        %399 = vmatpush.msra.mxu0 0.0
        %400 = vmatpush.msra.mxu0 0.0
        %401 = vmatpush.msra.mxu0 0.0
        %402 = vmatpush.msra.mxu0 0.0
        %403 = vmatpush.msra.mxu0 0.0
        %404 = vmatpush.msra.mxu0 %v386
        %405 = vmatpush.msra.mxu0 %v385
        %406 = vmatpush.msra.mxu0 %v384
        %407 = vmatpush.msra.mxu0 %v383
        %408 = vmatmul.f32.gmra.mxu0 %v360
        %v409 = vpop.f32.mrf.mxu0
        %v410 = vadd.f32 %v390, %v409
        %411 = vdwg.mxu0
        %s412 = scalar_lea.vmem %s3, %s347
        %v413 = vld [vmem:[%s412] sm:$0xff]
        %v414 = vld [vmem:[%s412 + $0x8] sm:$0xff]
        %v415 = vld [vmem:[%s412 + $0x10] sm:$0xff]
        %v416 = vld [vmem:[%s412 + $0x18] sm:$0xff]
        %s417 = scalar_lea.vmem %s6, %s28
        %v418 = vld [vmem:[%s417] sm:$0x1]
        %v420 = vperm.slane %v418, 0
        %422 = vmatpush.msra.mxu0 0.0
        %423 = vmatpush.msra.mxu0 0.0
        %424 = vmatpush.msra.mxu0 0.0
        %425 = vmatpush.msra.mxu0 0.0
        %426 = vmatpush.msra.mxu0 0.0
        %427 = vmatpush.msra.mxu0 0.0
        %428 = vmatpush.msra.mxu0 0.0
        %429 = vmatpush.msra.mxu0 0.0
        %430 = vmatpush.msra.mxu0 0.0
        %431 = vmatpush.msra.mxu0 0.0
        %432 = vmatpush.msra.mxu0 0.0
        %433 = vmatpush.msra.mxu0 0.0
        %434 = vmatpush.msra.mxu0 %v416
        %435 = vmatpush.msra.mxu0 %v415
        %436 = vmatpush.msra.mxu0 %v414
        %437 = vmatpush.msra.mxu0 %v413
        %438 = vmatmul.f32.gmra.mxu0 %v360
        %v439 = vpop.f32.mrf.mxu0
        %v440 = vadd.f32 %v420, %v439
        %441 = vdwg.mxu0
        %vm442 = vcmask 64512
        %v444 = vsel %vm442, %v380, 0
        %v447 = vsel %vm442, %v410, 0
        %449 = vmatpush.xpose.msra.mxu0 0.0
        %450 = vmatpush.xpose.msra.mxu0 0.0
        %451 = vmatpush.xpose.msra.mxu0 0.0
        %452 = vmatpush.xpose.msra.mxu0 0.0
        %453 = vmatpush.xpose.msra.mxu0 0.0
        %454 = vmatpush.xpose.msra.mxu0 0.0
        %455 = vmatpush.xpose.msra.mxu0 0.0
        %456 = vmatpush.xpose.msra.mxu0 0.0
        %457 = vmatpush.xpose.msra.mxu0 0.0
        %458 = vmatpush.xpose.msra.mxu0 0.0
        %459 = vmatpush.xpose.msra.mxu0 0.0
        %460 = vmatpush.xpose.msra.mxu0 0.0
        %461 = vmatpush.xpose.msra.mxu0 0.0
        %462 = vmatpush.xpose.msra.mxu0 0.0
        %463 = vmatpush.xpose.msra.mxu0 0.0
        %464 = vmatpush.xpose.msra.mxu0 %v447
        %465 = vmatmul.f32.gmra.mxu0 %v444
        %v466 = vpop.f32.mrf.mxu0
        %v467 = vadd.f32 0.0, %v466
        %468 = vdwg.mxu0
        %v469 = vsel %vm442, %v467, -inf
        %470 = vmax.xlane.f32.xlu0 %v469
        %v471 = vpop.xlane.xlu0 %470
        %v472 = vsub.f32 %v467, %v471
        %v473 = vmul.f32 %v472, 1.442695
        %v474 = vpow.pop %v473
        %v475 = vsel %vm442, %v474, 0.0
        %476 = vadd.xlane.f32.xlu0 %v475
        %v477 = vpop.xlane.xlu0 %476
        %v478 = vrcp.pop %v477
        %v479 = vmul.f32 %v477, %v478
        %v480 = vsub.f32 1.0, %v479
        %v481 = vmul.f32 %v478, %v480
        %v482 = vadd.f32 %v478, %v481
        %vm483 = vweird.f32 %v477
        %vm484 = vweird.f32 %v478
        %vm485 = vmor %vm483, %vm484
        %v486 = vsel %vm485, %v478, %v482
        %v487 = vand.u32 2147483647, %v477
        %vm488 = vcmp.eq.f32.partialorder %v487, 8.507059e+37
        %v489 = vand.u32 %v477, 2147483648
        %v490 = vor.u32 1.1754944e-38, %v489
        %v491 = vsel %vm488, %v490, %v486
        %v492 = vmul.f32 %v474, %v491
        %v494 = vsel %vm442, %v492, 0
        %496 = vmatpush.msra.mxu0 0.0
        %497 = vmatpush.msra.mxu0 0.0
        %498 = vmatpush.msra.mxu0 0.0
        %499 = vmatpush.msra.mxu0 0.0
        %500 = vmatpush.msra.mxu0 0.0
        %501 = vmatpush.msra.mxu0 0.0
        %502 = vmatpush.msra.mxu0 0.0
        %503 = vmatpush.msra.mxu0 0.0
        %504 = vmatpush.msra.mxu0 0.0
        %505 = vmatpush.msra.mxu0 0.0
        %506 = vmatpush.msra.mxu0 0.0
        %507 = vmatpush.msra.mxu0 0.0
        %508 = vmatpush.msra.mxu0 0.0
        %509 = vmatpush.msra.mxu0 0.0
        %510 = vmatpush.msra.mxu0 0.0
        %511 = vmatpush.msra.mxu0 %v440
        %512 = vmatmul.f32.gmra.mxu0 %v494
        %v513 = vpop.f32.mrf.mxu0
        %v514 = vadd.f32 0.0, %v513
        %515 = vdwg.mxu0
        %v516 = vld [vmem:[#allocation2] sm:$0xff]
        %s517 = smul.u32 %s28, 8
        %s518 = scalar_lea.vmem %s7, %s517
        %v519 = vld [vmem:[%s518] sm:$0xff]
        %v521 = vsel %vm442, %v514, 0
        %523 = vmatpush.msra.mxu0 0.0
        %524 = vmatpush.msra.mxu0 0.0
        %525 = vmatpush.msra.mxu0 0.0
        %526 = vmatpush.msra.mxu0 0.0
        %527 = vmatpush.msra.mxu0 0.0
        %528 = vmatpush.msra.mxu0 0.0
        %529 = vmatpush.msra.mxu0 0.0
        %530 = vmatpush.msra.mxu0 0.0
        %531 = vmatpush.msra.mxu0 0.0
        %532 = vmatpush.msra.mxu0 0.0
        %533 = vmatpush.msra.mxu0 0.0
        %534 = vmatpush.msra.mxu0 0.0
        %535 = vmatpush.msra.mxu0 0.0
        %536 = vmatpush.msra.mxu0 0.0
        %537 = vmatpush.msra.mxu0 0.0
        %538 = vmatpush.msra.mxu0 %v519
        %539 = vmatmul.f32.gmra.mxu0 %v521
        %v540 = vpop.f32.mrf.mxu0
        %v541 = vadd.f32 0.0, %v540
        %542 = vdwg.mxu0
        %v543 = vadd.f32 %v516, %v541
        %544 = vst.msk [vmem:[#allocation2] sm:$0xff] %vm358, %v543
        %p545 = scmp.eq.s32.totalorder %s28, 3
        // Predicated region
        $region61: #{tpu_custom_call.1} parent=55 // pred_check
          %p546 = pneg %p545
        $region62: #{tpu_custom_call.1} parent=55 // pred_check_branch
          %548 = sbr.rel (%p546) target = $region64
        $region63: #{tpu_custom_call.1} parent=55 // pred_region
          %v549 = vld [vmem:[#allocation2] sm:$0xff]
          %v550 = vld [vmem:[%s8] sm:$0x1]
          %v552 = vperm.slane %v550, 0
          %v554 = vadd.f32 %v549, %v552
          %555 = vst.msk [vmem:[%s335] sm:$0xff] %vm358, %v554
        $region64: #{tpu_custom_call.1} parent=55 // pred_fallthru
          _
        %s556 = sand.u32 %s237, 1
        %s557 = scalar_lea.sflag [#allocation4], %s556
        %s558 = sand.u32 %s237, 1
        %s559 = smul.addr %s558, 8
        %s560 = scalar_lea.vmem [#allocation3], %s559
        // Predicated region
        $region65: #{tpu_custom_call.1} parent=55 // pred_check
          %p561 = pneg %p247
        $region66: #{tpu_custom_call.1} parent=55 // pred_check_branch
          %563 = sbr.rel (%p561) target = $region68
        $region67: #{tpu_custom_call.1} parent=55 // pred_region
          %565 = vsyncadd %s557, 0
          %s566 = smul.addr %s27, 8
          %s567 = scalar_lea.hbm %s9, %s566
          %s569 = sshll.u32 %s560, 4
          %s570 = int_to_ptr.vmem [resolvable:$true] %s569
          %s571 = sshll.u32 %s567, 4
          %s572 = int_to_ptr.hbm [resolvable:$true] %s571
          %574 = dma.vmem_to_hbm [thread:$0]  %s570, 128, %s572, %s557
        $region68: #{tpu_custom_call.1} parent=55 // pred_fallthru
          _
      $region56: #{tpu_custom_call.1} parent=5 // pred_fallthru
        _
      %p575 = scmp.le.s32.totalorder 2, %s18
      // Predicated region
      $region69: #{tpu_custom_call.1} parent=5 // pred_check
        %p576 = pneg %p575
      $region70: #{tpu_custom_call.1} parent=5 // pred_check_branch
        %578 = sbr.rel (%p576) target = $region72
      $region71: #{tpu_custom_call.1} parent=5 // pred_region
        %s579 = ssub.s32 %s18, 2
        // Predicated region
        $region73: #{tpu_custom_call.1} parent=71 // pred_check
          %p580 = pneg %p253
        $region74: #{tpu_custom_call.1} parent=71 // pred_check_branch
          %582 = sbr.rel (%p580) target = $region76
        $region75: #{tpu_custom_call.1} parent=71 // pred_region
          %s583 = sand.u32 %s238, 1
          %s584 = scalar_lea.sflag [#allocation4], %s583
          %s585 = sand.u32 %s238, 1
          %s586 = smul.addr %s585, 8
          %s587 = scalar_lea.vmem [#allocation3], %s586
          %589 = dma.done %s584, 128
        $region76: #{tpu_custom_call.1} parent=71 // pred_fallthru
          _
      $region72: #{tpu_custom_call.1} parent=5 // pred_fallthru
        _
    $region6: #{tpu_custom_call.1} parent=1 // loop_footer
      %s22 = sadd.s32 1, %s18
    $region7: #{tpu_custom_call.1} parent=1 // loop_footer_branch
      %17 = sbr.rel target = $region3
    $region8: #{tpu_custom_call.1} parent=1 // loop_exit
      _
    %590 = vsyncpa [#allocation4], 1
    %s591 = scalar_lea.sflag [#allocation4], 1
    %592 = vsyncpa %s591, 1

</llo_original>
